<compile_context>
chip_gen: v5e
topology: v5e:2x2
jax: 0.10.0
libtpu: 0.0.40
codegen_flags: <defaults>
</compile_context>

<pallas_src>
import functools

import jax
import jax.numpy as jnp
import numpy as np
from jax import lax
from jax.experimental import pallas as pl
from jax.experimental.pallas import tpu as pltpu


def _ocr_kernel(x_ref, p_ref, w_ref, b_ref, out_ref, *,
                n_batch, in_channels, key_channels):
    f32 = jnp.float32
    relu = lambda t: jnp.maximum(t, 0.0)
    C, K = in_channels, key_channels

    # Unpack the packed parameter slabs with static slices.  All row offsets
    # are multiples of K (=8 here), i.e. f32-sublane-tile aligned, so the
    # slices stay free of cross-tile copies.
    w = w_ref[...]          # (R_pad, max(C, K))
    b = b_ref[...]          # (R_pad, 1)
    r0 = 0
    w1p, b1p = w[r0:r0 + K, :C], b[r0:r0 + K]            # f_pixel[0]
    r1 = r0 + K
    w2p, b2p = w[r1:r1 + K, :K], b[r1:r1 + K]            # f_pixel[1] (K**-0.5 folded)
    r2 = r1 + K
    wkv, bkv = w[r2:r2 + 2 * K, :C], b[r2:r2 + 2 * K]    # f_object[0] ++ f_down
    r3 = r2 + 2 * K
    w2o, b2o = w[r3:r3 + K, :K], b[r3:r3 + K]            # f_object[1]
    r4 = r3 + K
    wu, bu = w[r4:r4 + C, :K], b[r4:r4 + C]              # f_up

    # N is tiny (2): unroll the batch loop so there is a single grid step and
    # the params above are loaded exactly once.
    for n in range(n_batch):
        x_t = x_ref[n]   # (C, HW)  channel-first, HW lane-dense
        p_t = p_ref[n]   # (C, M)

        # f_pixel: two folded conv1x1+BN+ReLU stages -> query^T (K, HW).
        q_t = relu(jnp.dot(w1p, x_t, preferred_element_type=f32) + b1p)
        q_t = relu(jnp.dot(w2p, q_t, preferred_element_type=f32) + b2p)

        # f_object stage-1 and f_down fused into one matmul on the proxy.
        kv = relu(jnp.dot(wkv, p_t, preferred_element_type=f32) + bkv)   # (2K, M)
        k1_t = kv[:K]    # (K, M)  f_object stage-1 activation (8-row aligned split)
        v_t = kv[K:]     # (K, M)  value^T
        k_t = relu(jnp.dot(w2o, k1_t, preferred_element_type=f32) + b2o)

        # sim^T[m, hw] = sum_k key^T[k, m] * query^T[k, hw]
        sim_t = lax.dot_general(k_t, q_t, (((0,), (0,)), ((), ())),
                                preferred_element_type=f32)              # (M, HW)

        # softmax over the M (sublane) axis; exact division for the denominator.
        sim_t = sim_t - jnp.max(sim_t, axis=0, keepdims=True)
        e = jnp.exp(sim_t)
        sim_t = e / jnp.sum(e, axis=0, keepdims=True)

        # context^T = value^T @ sim^T -> (K, HW); f_up -> (C, HW) == NCHW slab.
        ctx_t = jnp.dot(v_t, sim_t, preferred_element_type=f32)
        out_t = relu(jnp.dot(wu, ctx_t, preferred_element_type=f32) + bu)

        # Merged lane-dense output slab: rows [0:C] = context, rows [C:C+M] = sim^T.
        out_ref[n] = jnp.concatenate([out_t, sim_t], axis=0)   # (C+M, HW)


def _fold_conv_bn(w_conv, gamma, beta, mean, var, eps=1e-5):
    """Fold 1x1 conv (out,in,1,1) + inference BN into W (out,in), b (out,)."""
    w = w_conv[:, :, 0, 0]                      # (out, in)
    scale = gamma / jnp.sqrt(var + eps)         # (out,)
    w_eff = w * scale[:, None]                  # (out, in)
    b_eff = beta - scale * mean                 # (out,)
    return w_eff.astype(jnp.float32), b_eff.astype(jnp.float32)


def make_params(key, in_channels, key_channels):
    """Deterministic synthetic parameters for the four conv/BN stacks."""

    def conv_bn(k, cin, cout):
        kw, kg, kb = jax.random.split(k, 3)
        w = 0.2 * jax.random.normal(kw, (cout, cin, 1, 1), jnp.float32)
        gamma = 1.0 + 0.1 * jax.random.normal(kg, (cout,), jnp.float32)
        beta = 0.1 * jax.random.normal(kb, (cout,), jnp.float32)
        # Fixed running stats (inference-mode BatchNorm semantics).
        mean = 0.05 * jnp.arange(cout, dtype=jnp.float32)
        var = 1.0 + 0.02 * jnp.arange(cout, dtype=jnp.float32)
        return _fold_conv_bn(w, gamma, beta, mean, var)

    ks = jax.random.split(key, 6)
    w1p, b1p = conv_bn(ks[0], in_channels, key_channels)   # f_pixel[0]
    w2p, b2p = conv_bn(ks[1], key_channels, key_channels)  # f_pixel[1]
    w1o, b1o = conv_bn(ks[2], in_channels, key_channels)   # f_object[0]
    w2o, b2o = conv_bn(ks[3], key_channels, key_channels)  # f_object[1]
    wd, bd = conv_bn(ks[4], in_channels, key_channels)     # f_down
    wu, bu = conv_bn(ks[5], key_channels, in_channels)     # f_up
    return (w1p, b1p, w2p, b2p, w1o, b1o, w2o, b2o, wd, bd, wu, bu)


def _prep_kernel_params(params, in_channels, key_channels):
    """Pack all folded params into one weight slab + one bias slab.

    Layout (row offsets are multiples of K, 8-sublane aligned for f32):
      rows [0      , K    ) : w1p   (K, C)   f_pixel[0]
      rows [K      , 2K   ) : w2p*s (K, K)   f_pixel[1], K**-0.5 folded in
      rows [2K     , 4K   ) : wkv   (2K, C)  concat(f_object[0], f_down)
      rows [4K     , 5K   ) : w2o   (K, K)   f_object[1]
      rows [5K     , 5K+C ) : wu    (C, K)   f_up
    Columns are zero-padded to max(C, K).  Biases use the same row layout,
    stored as a single (rows, 1) column.
    """
    (w1p, b1p, w2p, b2p, w1o, b1o, w2o, b2o, wd, bd, wu, bu) = params
    C, K = in_channels, key_channels
    s = jnp.float32(K ** -0.5)
    # relu is positively homogeneous: relu(s*z) == s*relu(z) for s > 0.
    w2p_s, b2p_s = w2p * s, b2p * s
    wkv = jnp.concatenate([w1o, wd], axis=0)   # (2K, C)
    bkv = jnp.concatenate([b1o, bd], axis=0)   # (2K,)

    wmax = max(C, K)

    def pad_cols(wmat):
        return jnp.pad(wmat, ((0, 0), (0, wmax - wmat.shape[1])))

    w_slab = jnp.concatenate(
        [pad_cols(w1p), pad_cols(w2p_s), pad_cols(wkv), pad_cols(w2o), pad_cols(wu)],
        axis=0).astype(jnp.float32)                              # (5K+C, wmax)
    b_slab = jnp.concatenate([b1p, b2p_s, bkv, b2o, bu],
                             axis=0)[:, None].astype(jnp.float32)  # (5K+C, 1)

    # Pad row count to a multiple of 8 (f32 sublane tile) for tidiness.
    rows = w_slab.shape[0]
    rows_pad = (-rows) % 8
    if rows_pad:
        w_slab = jnp.pad(w_slab, ((0, rows_pad), (0, 0)))
        b_slab = jnp.pad(b_slab, ((0, rows_pad), (0, 0)))
    return w_slab, b_slab


def spatial_ocr_context(feats, proxy_feats, params, key_channels):
    """feats: (N,C,H,W), proxy_feats: (N,C,Hp,Wp).

    Returns (context NCHW, sim_map_t) where sim_map_t has the lane-dense
    (N, M, HW) layout (== PyTorch sim_map transposed on its last two dims).
    """
    N, C, H, W = feats.shape
    _, _, Hp, Wp = proxy_feats.shape
    HW, M = H * W, Hp * Wp

    # Channel-first / lane-dense layouts: straight reshapes of NCHW, no transposes.
    x_t = feats.reshape(N, C, HW)
    p_t = proxy_feats.reshape(N, C, M)

    w_slab, b_slab = _prep_kernel_params(params, C, key_channels)

    out = pl.pallas_call(
        functools.partial(_ocr_kernel, n_batch=N, in_channels=C,
                          key_channels=key_channels),
        grid=(1,),   # single grid step: batch handled by unrolled in-kernel loop
        in_specs=[
            pl.BlockSpec((N, C, HW), lambda i: (0, 0, 0)),
            pl.BlockSpec((N, C, M), lambda i: (0, 0, 0)),
            pl.BlockSpec(w_slab.shape, lambda i: (0, 0)),
            pl.BlockSpec(b_slab.shape, lambda i: (0, 0)),
        ],
        out_specs=pl.BlockSpec((N, C + M, HW), lambda i: (0, 0, 0)),
        out_shape=jax.ShapeDtypeStruct((N, C + M, HW), jnp.float32),
        compiler_params=pltpu.CompilerParams(
            dimension_semantics=("arbitrary",)),
    )(x_t, p_t, w_slab, b_slab)

    context = out[:, :C, :].reshape(N, C, H, W)   # already NCHW; no transpose
    sim_map_t = out[:, C:, :]                     # (N, M, HW) lane-dense
    return context, sim_map_t


def _reference_numpy(feats, proxy_feats, params, key_channels):
    """Pure-numpy float64 reference of the same folded-BN forward pass."""
    (w1p, b1p, w2p, b2p, w1o, b1o, w2o, b2o, wd, bd, wu, bu) = [
        np.asarray(p, dtype=np.float64) for p in params]
    feats = np.asarray(feats, dtype=np.float64)
    proxy_feats = np.asarray(proxy_feats, dtype=np.float64)
    N, C, H, W = feats.shape
    _, _, Hp, Wp = proxy_feats.shape
    HW, M = H * W, Hp * Wp
    x = feats.reshape(N, C, HW).transpose(0, 2, 1)        # (N, HW, C)
    p = proxy_feats.reshape(N, C, M).transpose(0, 2, 1)   # (N, M,  C)
    relu = lambda t: np.maximum(t, 0.0)
    q = relu(relu(x @ w1p.T + b1p) @ w2p.T + b2p)          # (N, HW, K)
    k = relu(relu(p @ w1o.T + b1o) @ w2o.T + b2o)          # (N, M,  K)
    v = relu(p @ wd.T + bd)                                # (N, M,  K)
    sim = np.einsum("nqk,nmk->nqm", q, k) * (key_channels ** -0.5)
    sim = sim - sim.max(axis=-1, keepdims=True)
    sim = np.exp(sim)
    sim = sim / sim.sum(axis=-1, keepdims=True)            # (N, HW, M)
    ctx = np.einsum("nqm,nmk->nqk", sim, v)
    out = relu(ctx @ wu.T + bu)
    context = out.transpose(0, 2, 1).reshape(N, C, H, W)
    return context, sim


if __name__ == "__main__":
    in_channels, key_channels = 4, 8
    N, H, W = 2, 16, 16
    Hp, Wp = 8, 1   # proxy "object region" features: (N, C, K_regions, 1)

    root = jax.random.PRNGKey(0)
    k_feats, k_proxy, k_params = jax.random.split(root, 3)
    feats = jax.random.normal(k_feats, (N, in_channels, H, W), jnp.float32)
    proxy_feats = jax.random.normal(k_proxy, (N, in_channels, Hp, Wp), jnp.float32)
    params = make_params(k_params, in_channels, key_channels)

    context, sim_map_t = spatial_ocr_context(feats, proxy_feats, params, key_channels)
    context = jax.block_until_ready(context)
    sim_map_t = jax.block_until_ready(sim_map_t)

    ref_ctx, ref_sim = _reference_numpy(feats, proxy_feats, params, key_channels)
    np.testing.assert_allclose(np.asarray(context), ref_ctx.astype(np.float32),
                               rtol=1e-4, atol=1e-4)
    # Kernel returns sim in lane-dense (N, M, HW) layout == module sim_map
    # with its last two dims transposed.
    np.testing.assert_allclose(np.asarray(sim_map_t),
                               np.transpose(ref_sim, (0, 2, 1)).astype(np.float32),
                               rtol=1e-4, atol=1e-4)

    assert context.shape == (N, in_channels, H, W)
    assert sim_map_t.shape == (N, Hp * Wp, H * W)
    print("KERNEL_OK")
</pallas_src>

<mosaic_0001>
module attributes {stable_mosaic.version = 11 : i64} {
  func.func @_ocr_kernel(%arg0: i32, %arg1: memref<2x4x256xf32, #tpu.memory_space<vmem>>, %arg2: memref<2x4x8xf32, #tpu.memory_space<vmem>>, %arg3: memref<48x8xf32, #tpu.memory_space<vmem>>, %arg4: memref<48x1xf32, #tpu.memory_space<vmem>>, %arg5: memref<2x12x256xf32, #tpu.memory_space<vmem>>) attributes {dimension_semantics = [#tpu.dimension_semantics<arbitrary>], iteration_bounds = array<i64: 1>, scalar_prefetch = 0 : i64, scratch_operands = 0 : i64, tpu.core_type = #tpu.core_type<tc>, window_params = [{pipeline_mode = #tpu.pipeline_mode<synchronous>, transform_indices = @transform_0, window_bounds = array<i64: 2, 4, 256>}, {pipeline_mode = #tpu.pipeline_mode<synchronous>, transform_indices = @transform_1, window_bounds = array<i64: 2, 4, 8>}, {pipeline_mode = #tpu.pipeline_mode<synchronous>, transform_indices = @transform_2, window_bounds = array<i64: 48, 8>}, {pipeline_mode = #tpu.pipeline_mode<synchronous>, transform_indices = @transform_3, window_bounds = array<i64: 48, 1>}, {pipeline_mode = #tpu.pipeline_mode<synchronous>, transform_indices = @transform_4, window_bounds = array<i64: 2, 12, 256>}]} {
    %c0 = arith.constant 0 : index
    %c0_0 = arith.constant 0 : index
    %0 = vector.load %arg3[%c0, %c0_0] : memref<48x8xf32, #tpu.memory_space<vmem>>, vector<48x8xf32>
    %c0_1 = arith.constant 0 : index
    %c0_2 = arith.constant 0 : index
    %1 = vector.load %arg4[%c0_1, %c0_2] : memref<48x1xf32, #tpu.memory_space<vmem>>, vector<48x1xf32>
    %2 = vector.extract_strided_slice %0 {offsets = [0, 0], sizes = [8, 4], strides = [1, 1]} : vector<48x8xf32> to vector<8x4xf32>
    %3 = vector.extract_strided_slice %1 {offsets = [0, 0], sizes = [8, 1], strides = [1, 1]} : vector<48x1xf32> to vector<8x1xf32>
    %4 = vector.extract_strided_slice %0 {offsets = [8, 0], sizes = [8, 8], strides = [1, 1]} : vector<48x8xf32> to vector<8x8xf32>
    %5 = vector.extract_strided_slice %1 {offsets = [8, 0], sizes = [8, 1], strides = [1, 1]} : vector<48x1xf32> to vector<8x1xf32>
    %6 = vector.extract_strided_slice %0 {offsets = [16, 0], sizes = [16, 4], strides = [1, 1]} : vector<48x8xf32> to vector<16x4xf32>
    %7 = vector.extract_strided_slice %1 {offsets = [16, 0], sizes = [16, 1], strides = [1, 1]} : vector<48x1xf32> to vector<16x1xf32>
    %8 = vector.extract_strided_slice %0 {offsets = [32, 0], sizes = [8, 8], strides = [1, 1]} : vector<48x8xf32> to vector<8x8xf32>
    %9 = vector.extract_strided_slice %1 {offsets = [32, 0], sizes = [8, 1], strides = [1, 1]} : vector<48x1xf32> to vector<8x1xf32>
    %10 = vector.extract_strided_slice %0 {offsets = [40, 0], sizes = [4, 8], strides = [1, 1]} : vector<48x8xf32> to vector<4x8xf32>
    %11 = vector.extract_strided_slice %1 {offsets = [40, 0], sizes = [4, 1], strides = [1, 1]} : vector<48x1xf32> to vector<4x1xf32>
    %c0_3 = arith.constant 0 : index
    %c0_4 = arith.constant 0 : index
    %c0_5 = arith.constant 0 : index
    %12 = vector.load %arg1[%c0_3, %c0_4, %c0_5] : memref<2x4x256xf32, #tpu.memory_space<vmem>>, vector<1x4x256xf32>
    %13 = vector.shape_cast %12 : vector<1x4x256xf32> to vector<4x256xf32>
    %c0_6 = arith.constant 0 : index
    %c0_7 = arith.constant 0 : index
    %c0_8 = arith.constant 0 : index
    %14 = vector.load %arg2[%c0_6, %c0_7, %c0_8] : memref<2x4x8xf32, #tpu.memory_space<vmem>>, vector<1x4x8xf32>
    %15 = vector.shape_cast %14 : vector<1x4x8xf32> to vector<4x8xf32>
    %cst = arith.constant dense<0.000000e+00> : vector<8x256xf32>
    %16 = tpu.matmul %2, %13, %cst {dimension_numbers = #tpu.dot_dimension_numbers<[1], [0], [0], [1], [0, 0, 1, 1], [], []>} : vector<8x4xf32>, vector<4x256xf32>, vector<8x256xf32> -> vector<8x256xf32>
    %17 = vector.broadcast %3 : vector<8x1xf32> to vector<8x256xf32>
    %18 = arith.addf %16, %17 : vector<8x256xf32>
    %cst_9 = arith.constant 0.000000e+00 : f32
    %19 = vector.broadcast %cst_9 : f32 to vector<8x256xf32>
    %20 = arith.maximumf %18, %19 : vector<8x256xf32>
    %cst_10 = arith.constant dense<0.000000e+00> : vector<8x256xf32>
    %21 = tpu.matmul %4, %20, %cst_10 {dimension_numbers = #tpu.dot_dimension_numbers<[1], [0], [0], [1], [0, 0, 1, 1], [], []>} : vector<8x8xf32>, vector<8x256xf32>, vector<8x256xf32> -> vector<8x256xf32>
    %22 = vector.broadcast %5 : vector<8x1xf32> to vector<8x256xf32>
    %23 = arith.addf %21, %22 : vector<8x256xf32>
    %cst_11 = arith.constant 0.000000e+00 : f32
    %24 = vector.broadcast %cst_11 : f32 to vector<8x256xf32>
    %25 = arith.maximumf %23, %24 : vector<8x256xf32>
    %cst_12 = arith.constant dense<0.000000e+00> : vector<16x8xf32>
    %26 = tpu.matmul %6, %15, %cst_12 {dimension_numbers = #tpu.dot_dimension_numbers<[1], [0], [0], [1], [0, 0, 1, 1], [], []>} : vector<16x4xf32>, vector<4x8xf32>, vector<16x8xf32> -> vector<16x8xf32>
    %27 = vector.broadcast %7 : vector<16x1xf32> to vector<16x8xf32>
    %28 = arith.addf %26, %27 : vector<16x8xf32>
    %cst_13 = arith.constant 0.000000e+00 : f32
    %29 = vector.broadcast %cst_13 : f32 to vector<16x8xf32>
    %30 = arith.maximumf %28, %29 : vector<16x8xf32>
    %31 = vector.extract_strided_slice %30 {offsets = [0, 0], sizes = [8, 8], strides = [1, 1]} : vector<16x8xf32> to vector<8x8xf32>
    %32 = vector.extract_strided_slice %30 {offsets = [8, 0], sizes = [8, 8], strides = [1, 1]} : vector<16x8xf32> to vector<8x8xf32>
    %cst_14 = arith.constant dense<0.000000e+00> : vector<8x8xf32>
    %33 = tpu.matmul %8, %31, %cst_14 {dimension_numbers = #tpu.dot_dimension_numbers<[1], [0], [0], [1], [0, 0, 1, 1], [], []>} : vector<8x8xf32>, vector<8x8xf32>, vector<8x8xf32> -> vector<8x8xf32>
    %34 = vector.broadcast %9 : vector<8x1xf32> to vector<8x8xf32>
    %35 = arith.addf %33, %34 : vector<8x8xf32>
    %cst_15 = arith.constant 0.000000e+00 : f32
    %36 = vector.broadcast %cst_15 : f32 to vector<8x8xf32>
    %37 = arith.maximumf %35, %36 : vector<8x8xf32>
    %cst_16 = arith.constant dense<0.000000e+00> : vector<8x256xf32>
    %38 = tpu.matmul %37, %25, %cst_16 {dimension_numbers = #tpu.dot_dimension_numbers<[0], [0], [1], [1], [0, 1, 1, 1], [], []>} : vector<8x8xf32>, vector<8x256xf32>, vector<8x256xf32> -> vector<8x256xf32>
    %cst_17 = arith.constant dense<0xFF800000> : vector<256xf32>
    %39 = vector.multi_reduction <maximumf>, %38, %cst_17 [0] : vector<8x256xf32> to vector<256xf32>
    %40 = vector.shape_cast %39 : vector<256xf32> to vector<1x256xf32>
    %41 = vector.broadcast %40 : vector<1x256xf32> to vector<8x256xf32>
    %42 = arith.subf %38, %41 : vector<8x256xf32>
    %43 = math.exp %42 : vector<8x256xf32>
    %cst_18 = arith.constant dense<0.000000e+00> : vector<256xf32>
    %44 = vector.multi_reduction <add>, %43, %cst_18 [0] : vector<8x256xf32> to vector<256xf32>
    %45 = vector.shape_cast %44 : vector<256xf32> to vector<1x256xf32>
    %46 = vector.broadcast %45 : vector<1x256xf32> to vector<8x256xf32>
    %47 = arith.divf %43, %46 : vector<8x256xf32>
    %cst_19 = arith.constant dense<0.000000e+00> : vector<8x256xf32>
    %48 = tpu.matmul %32, %47, %cst_19 {dimension_numbers = #tpu.dot_dimension_numbers<[1], [0], [0], [1], [0, 0, 1, 1], [], []>} : vector<8x8xf32>, vector<8x256xf32>, vector<8x256xf32> -> vector<8x256xf32>
    %cst_20 = arith.constant dense<0.000000e+00> : vector<4x256xf32>
    %49 = tpu.matmul %10, %48, %cst_20 {dimension_numbers = #tpu.dot_dimension_numbers<[1], [0], [0], [1], [0, 0, 1, 1], [], []>} : vector<4x8xf32>, vector<8x256xf32>, vector<4x256xf32> -> vector<4x256xf32>
    %50 = vector.broadcast %11 : vector<4x1xf32> to vector<4x256xf32>
    %51 = arith.addf %49, %50 : vector<4x256xf32>
    %cst_21 = arith.constant 0.000000e+00 : f32
    %52 = vector.broadcast %cst_21 : f32 to vector<4x256xf32>
    %53 = arith.maximumf %51, %52 : vector<4x256xf32>
    %54 = tpu.concatenate %53, %47 in 0 : vector<4x256xf32>, vector<8x256xf32> -> vector<12x256xf32>
    %c0_22 = arith.constant 0 : index
    %c0_23 = arith.constant 0 : index
    %c0_24 = arith.constant 0 : index
    %55 = vector.load %arg5[%c0_22, %c0_23, %c0_24] : memref<2x12x256xf32, #tpu.memory_space<vmem>>, vector<1x12x256xf32>
    %56 = vector.shape_cast %55 : vector<1x12x256xf32> to vector<12x256xf32>
    %57 = vector.shape_cast %54 : vector<12x256xf32> to vector<1x12x256xf32>
    tpu.vector_store %arg5[%c0_22, %c0_23, %c0_24], %57 {strides = array<i32>} : memref<2x12x256xf32, #tpu.memory_space<vmem>>, vector<1x12x256xf32>,
    %c1 = arith.constant 1 : index
    %c0_25 = arith.constant 0 : index
    %c0_26 = arith.constant 0 : index
    %58 = vector.load %arg1[%c1, %c0_25, %c0_26] : memref<2x4x256xf32, #tpu.memory_space<vmem>>, vector<1x4x256xf32>
    %59 = vector.shape_cast %58 : vector<1x4x256xf32> to vector<4x256xf32>
    %c1_27 = arith.constant 1 : index
    %c0_28 = arith.constant 0 : index
    %c0_29 = arith.constant 0 : index
    %60 = vector.load %arg2[%c1_27, %c0_28, %c0_29] : memref<2x4x8xf32, #tpu.memory_space<vmem>>, vector<1x4x8xf32>
    %61 = vector.shape_cast %60 : vector<1x4x8xf32> to vector<4x8xf32>
    %cst_30 = arith.constant dense<0.000000e+00> : vector<8x256xf32>
    %62 = tpu.matmul %2, %59, %cst_30 {dimension_numbers = #tpu.dot_dimension_numbers<[1], [0], [0], [1], [0, 0, 1, 1], [], []>} : vector<8x4xf32>, vector<4x256xf32>, vector<8x256xf32> -> vector<8x256xf32>
    %63 = vector.broadcast %3 : vector<8x1xf32> to vector<8x256xf32>
    %64 = arith.addf %62, %63 : vector<8x256xf32>
    %cst_31 = arith.constant 0.000000e+00 : f32
    %65 = vector.broadcast %cst_31 : f32 to vector<8x256xf32>
    %66 = arith.maximumf %64, %65 : vector<8x256xf32>
    %cst_32 = arith.constant dense<0.000000e+00> : vector<8x256xf32>
    %67 = tpu.matmul %4, %66, %cst_32 {dimension_numbers = #tpu.dot_dimension_numbers<[1], [0], [0], [1], [0, 0, 1, 1], [], []>} : vector<8x8xf32>, vector<8x256xf32>, vector<8x256xf32> -> vector<8x256xf32>
    %68 = vector.broadcast %5 : vector<8x1xf32> to vector<8x256xf32>
    %69 = arith.addf %67, %68 : vector<8x256xf32>
    %cst_33 = arith.constant 0.000000e+00 : f32
    %70 = vector.broadcast %cst_33 : f32 to vector<8x256xf32>
    %71 = arith.maximumf %69, %70 : vector<8x256xf32>
    %cst_34 = arith.constant dense<0.000000e+00> : vector<16x8xf32>
    %72 = tpu.matmul %6, %61, %cst_34 {dimension_numbers = #tpu.dot_dimension_numbers<[1], [0], [0], [1], [0, 0, 1, 1], [], []>} : vector<16x4xf32>, vector<4x8xf32>, vector<16x8xf32> -> vector<16x8xf32>
    %73 = vector.broadcast %7 : vector<16x1xf32> to vector<16x8xf32>
    %74 = arith.addf %72, %73 : vector<16x8xf32>
    %cst_35 = arith.constant 0.000000e+00 : f32
    %75 = vector.broadcast %cst_35 : f32 to vector<16x8xf32>
    %76 = arith.maximumf %74, %75 : vector<16x8xf32>
    %77 = vector.extract_strided_slice %76 {offsets = [0, 0], sizes = [8, 8], strides = [1, 1]} : vector<16x8xf32> to vector<8x8xf32>
    %78 = vector.extract_strided_slice %76 {offsets = [8, 0], sizes = [8, 8], strides = [1, 1]} : vector<16x8xf32> to vector<8x8xf32>
    %cst_36 = arith.constant dense<0.000000e+00> : vector<8x8xf32>
    %79 = tpu.matmul %8, %77, %cst_36 {dimension_numbers = #tpu.dot_dimension_numbers<[1], [0], [0], [1], [0, 0, 1, 1], [], []>} : vector<8x8xf32>, vector<8x8xf32>, vector<8x8xf32> -> vector<8x8xf32>
    %80 = vector.broadcast %9 : vector<8x1xf32> to vector<8x8xf32>
    %81 = arith.addf %79, %80 : vector<8x8xf32>
    %cst_37 = arith.constant 0.000000e+00 : f32
    %82 = vector.broadcast %cst_37 : f32 to vector<8x8xf32>
    %83 = arith.maximumf %81, %82 : vector<8x8xf32>
    %cst_38 = arith.constant dense<0.000000e+00> : vector<8x256xf32>
    %84 = tpu.matmul %83, %71, %cst_38 {dimension_numbers = #tpu.dot_dimension_numbers<[0], [0], [1], [1], [0, 1, 1, 1], [], []>} : vector<8x8xf32>, vector<8x256xf32>, vector<8x256xf32> -> vector<8x256xf32>
    %cst_39 = arith.constant dense<0xFF800000> : vector<256xf32>
    %85 = vector.multi_reduction <maximumf>, %84, %cst_39 [0] : vector<8x256xf32> to vector<256xf32>
    %86 = vector.shape_cast %85 : vector<256xf32> to vector<1x256xf32>
    %87 = vector.broadcast %86 : vector<1x256xf32> to vector<8x256xf32>
    %88 = arith.subf %84, %87 : vector<8x256xf32>
    %89 = math.exp %88 : vector<8x256xf32>
    %cst_40 = arith.constant dense<0.000000e+00> : vector<256xf32>
    %90 = vector.multi_reduction <add>, %89, %cst_40 [0] : vector<8x256xf32> to vector<256xf32>
    %91 = vector.shape_cast %90 : vector<256xf32> to vector<1x256xf32>
    %92 = vector.broadcast %91 : vector<1x256xf32> to vector<8x256xf32>
    %93 = arith.divf %89, %92 : vector<8x256xf32>
    %cst_41 = arith.constant dense<0.000000e+00> : vector<8x256xf32>
    %94 = tpu.matmul %78, %93, %cst_41 {dimension_numbers = #tpu.dot_dimension_numbers<[1], [0], [0], [1], [0, 0, 1, 1], [], []>} : vector<8x8xf32>, vector<8x256xf32>, vector<8x256xf32> -> vector<8x256xf32>
    %cst_42 = arith.constant dense<0.000000e+00> : vector<4x256xf32>
    %95 = tpu.matmul %10, %94, %cst_42 {dimension_numbers = #tpu.dot_dimension_numbers<[1], [0], [0], [1], [0, 0, 1, 1], [], []>} : vector<4x8xf32>, vector<8x256xf32>, vector<4x256xf32> -> vector<4x256xf32>
    %96 = vector.broadcast %11 : vector<4x1xf32> to vector<4x256xf32>
    %97 = arith.addf %95, %96 : vector<4x256xf32>
    %cst_43 = arith.constant 0.000000e+00 : f32
    %98 = vector.broadcast %cst_43 : f32 to vector<4x256xf32>
    %99 = arith.maximumf %97, %98 : vector<4x256xf32>
    %100 = tpu.concatenate %99, %93 in 0 : vector<4x256xf32>, vector<8x256xf32> -> vector<12x256xf32>
    %c1_44 = arith.constant 1 : index
    %c0_45 = arith.constant 0 : index
    %c0_46 = arith.constant 0 : index
    %101 = vector.load %arg5[%c1_44, %c0_45, %c0_46] : memref<2x12x256xf32, #tpu.memory_space<vmem>>, vector<1x12x256xf32>
    %102 = vector.shape_cast %101 : vector<1x12x256xf32> to vector<12x256xf32>
    %103 = vector.shape_cast %100 : vector<12x256xf32> to vector<1x12x256xf32>
    tpu.vector_store %arg5[%c1_44, %c0_45, %c0_46], %103 {strides = array<i32>} : memref<2x12x256xf32, #tpu.memory_space<vmem>>, vector<1x12x256xf32>,
    return
  }
  func.func @transform_0(%arg0: i32) -> (i32, i32, i32) {
    %c0_i32 = arith.constant 0 : i32
    %c0_i32_0 = arith.constant 0 : i32
    %c0_i32_1 = arith.constant 0 : i32
    %c0_i32_2 = arith.constant 0 : i32
    return %c0_i32, %c0_i32_0, %c0_i32_1 : i32, i32, i32
  }
  func.func @transform_1(%arg0: i32) -> (i32, i32, i32) {
    %c0_i32 = arith.constant 0 : i32
    %c0_i32_0 = arith.constant 0 : i32
    %c0_i32_1 = arith.constant 0 : i32
    %c0_i32_2 = arith.constant 0 : i32
    return %c0_i32, %c0_i32_0, %c0_i32_1 : i32, i32, i32
  }
  func.func @transform_2(%arg0: i32) -> (i32, i32) {
    %c0_i32 = arith.constant 0 : i32
    %c0_i32_0 = arith.constant 0 : i32
    %c0_i32_1 = arith.constant 0 : i32
    return %c0_i32, %c0_i32_0 : i32, i32
  }
  func.func @transform_3(%arg0: i32) -> (i32, i32) {
    %c0_i32 = arith.constant 0 : i32
    %c0_i32_0 = arith.constant 0 : i32
    %c0_i32_1 = arith.constant 0 : i32
    return %c0_i32, %c0_i32_0 : i32, i32
  }
  func.func @transform_4(%arg0: i32) -> (i32, i32, i32) {
    %c0_i32 = arith.constant 0 : i32
    %c0_i32_0 = arith.constant 0 : i32
    %c0_i32_1 = arith.constant 0 : i32
    %c0_i32_2 = arith.constant 0 : i32
    return %c0_i32, %c0_i32_0, %c0_i32_1 : i32, i32, i32
  }
}

</mosaic_0001>

<llo_original>
// kernel: tpu_custom_call.1
$region0: #{tpu_custom_call.1}
  #allocation0 [shape = 'u32[]', space=smem, size = 0x4, offset = 0x4, fixed_abs, tag = 'smem constant byte address 0x4 - core index']
  #allocation1 [shape = 'u32[72,128]{1,0:T(1,128)}', space=vmem, size = 0x9000, scoped, tag = 'internal scratch']
  %s0 = inlined_call_operand.vmem [shape: f32[2,4,256], index: 0, kind: input, shape index: {}]
  %s1 = inlined_call_operand.vmem [shape: f32[2,4,8], index: 1, kind: input, shape index: {}]
  %s2 = inlined_call_operand.vmem [shape: f32[48,8], index: 2, kind: input, shape index: {}]
  %s3 = inlined_call_operand.vmem [shape: f32[48,1], index: 3, kind: input, shape index: {}]
  %s4 = inlined_call_operand.vmem [shape: f32[2,12,256], index: 4, kind: output, shape index: {}]
  %s5 = sld [smem:[#allocation0]]
  $region26: #{tpu_custom_call.1} parent=0
    _
  %s7 = ssub.s32 1, %s5
  %s8 = scalar_select 0, %s7, %s5
  // Predicated region
  $region2: #{tpu_custom_call.1} parent=0 // pred_check
    _
  $region3: #{tpu_custom_call.1} parent=0 // pred_check_branch
    %10 = sbr.rel (0) target = $region5
  $region4: #{tpu_custom_call.1} parent=0 // pred_region
    _
  $region5: #{tpu_custom_call.1} parent=0 // pred_fallthru
    _
  // Predicated region
  $region6: #{tpu_custom_call.1} parent=0 // pred_check
    _
  $region7: #{tpu_custom_call.1} parent=0 // pred_check_branch
    %12 = sbr.rel (0) target = $region9
  $region8: #{tpu_custom_call.1} parent=0 // pred_region
    _
  $region9: #{tpu_custom_call.1} parent=0 // pred_fallthru
    _
  // Predicated region
  $region10: #{tpu_custom_call.1} parent=0 // pred_check
    _
  $region11: #{tpu_custom_call.1} parent=0 // pred_check_branch
    %14 = sbr.rel (0) target = $region13
  $region12: #{tpu_custom_call.1} parent=0 // pred_region
    _
  $region13: #{tpu_custom_call.1} parent=0 // pred_fallthru
    _
  // Predicated region
  $region14: #{tpu_custom_call.1} parent=0 // pred_check
    _
  $region15: #{tpu_custom_call.1} parent=0 // pred_check_branch
    %16 = sbr.rel (0) target = $region17
  $region16: #{tpu_custom_call.1} parent=0 // pred_region
    _
  $region17: #{tpu_custom_call.1} parent=0 // pred_fallthru
    _
  %v17 = vld [vmem:[%s2] sm:$0xff]
  %v18 = vld [vmem:[%s2 + $0x8] sm:$0xff]
  %v19 = vld [vmem:[%s2 + $0x10] sm:$0xff]
  %v20 = vld [vmem:[%s2 + $0x18] sm:$0xff]
  %v21 = vld [vmem:[%s2 + $0x20] sm:$0xff]
  %v22 = vld [vmem:[%s2 + $0x28] sm:$0xff]
  %v23 = vld [vmem:[%s3] sm:$0xff]
  %v24 = vld [vmem:[%s3 + $0x8] sm:$0xff]
  %v25 = vld [vmem:[%s3 + $0x10] sm:$0xff]
  %v26 = vld [vmem:[%s3 + $0x18] sm:$0xff]
  %v27 = vld [vmem:[%s3 + $0x20] sm:$0xff]
  %v28 = vld [vmem:[%s3 + $0x28] sm:$0xff]
  %v29 = vld [vmem:[%s0] sm:$0xff]
  %v30 = vld [vmem:[%s1] sm:$0xf]
  %32 = vset.pattern.permute.xlu0 0
  %33 = vperm.xlu0 %32, %v23
  %v34 = vpop.permute.xlu0 %33
  %37 = vst [vmem:[#allocation1] ss:$2 sm:$0xff] %v29
  %v38 = vld.sshfl [vmem:[#allocation1] sm:$0xff pattern:$0x75316420]
  %v39 = vld.sshfl [vmem:[#allocation1 + $0x8] sm:$0xff pattern:$0x75316420]
  %vm40 = vcmask 31744
  %v42 = vsel %vm40, %v17, 0
  %vm44 = vcmask 1043456
  %v45 = vsel %vm44, %v38, 0
  %v47 = vsel %vm44, %v39, 0
  %49 = vmatpush.msra.mxu0 0.0
  %50 = vmatpush.msra.mxu0 0.0
  %51 = vmatpush.msra.mxu0 0.0
  %52 = vmatpush.msra.mxu0 0.0
  %53 = vmatpush.msra.mxu0 0.0
  %54 = vmatpush.msra.mxu0 0.0
  %55 = vmatpush.msra.mxu0 0.0
  %56 = vmatpush.msra.mxu0 0.0
  %57 = vmatpush.msra.mxu0 0.0
  %58 = vmatpush.msra.mxu0 0.0
  %59 = vmatpush.msra.mxu0 0.0
  %60 = vmatpush.msra.mxu0 0.0
  %61 = vmatpush.msra.mxu0 0.0
  %62 = vmatpush.msra.mxu0 0.0
  %63 = vmatpush.msra.mxu0 0.0
  %64 = vmatpush.msra.mxu0 %v45
  %65 = vmatmul.f32.gmra.mxu0 %v42
  %v66 = vpop.f32.mrf.mxu0
  %v67 = vadd.f32 %v34, %v66
  %68 = vdwg.mxu0
  %69 = vmatpush.msra.mxu0 0.0
  %70 = vmatpush.msra.mxu0 0.0
  %71 = vmatpush.msra.mxu0 0.0
  %72 = vmatpush.msra.mxu0 0.0
  %73 = vmatpush.msra.mxu0 0.0
  %74 = vmatpush.msra.mxu0 0.0
  %75 = vmatpush.msra.mxu0 0.0
  %76 = vmatpush.msra.mxu0 0.0
  %77 = vmatpush.msra.mxu0 0.0
  %78 = vmatpush.msra.mxu0 0.0
  %79 = vmatpush.msra.mxu0 0.0
  %80 = vmatpush.msra.mxu0 0.0
  %81 = vmatpush.msra.mxu0 0.0
  %82 = vmatpush.msra.mxu0 0.0
  %83 = vmatpush.msra.mxu0 0.0
  %84 = vmatpush.msra.mxu0 %v47
  %85 = vmatmul.f32.gmra.mxu0 %v42
  %v86 = vpop.f32.mrf.mxu0
  %v87 = vadd.f32 %v34, %v86
  %88 = vdwg.mxu0
  %v89 = vmax.f32 %v67, 0.0
  %v90 = vmax.f32 %v87, 0.0
  %92 = vset.pattern.permute.xlu0 0
  %93 = vperm.xlu0 %92, %v24
  %v94 = vpop.permute.xlu0 %93
  %vm96 = vcmask 64512
  %v98 = vsel %vm96, %v18, 0
  %100 = vmatpush.msra.mxu0 0.0
  %101 = vmatpush.msra.mxu0 0.0
  %102 = vmatpush.msra.mxu0 0.0
  %103 = vmatpush.msra.mxu0 0.0
  %104 = vmatpush.msra.mxu0 0.0
  %105 = vmatpush.msra.mxu0 0.0
  %106 = vmatpush.msra.mxu0 0.0
  %107 = vmatpush.msra.mxu0 0.0
  %108 = vmatpush.msra.mxu0 0.0
  %109 = vmatpush.msra.mxu0 0.0
  %110 = vmatpush.msra.mxu0 0.0
  %111 = vmatpush.msra.mxu0 0.0
  %112 = vmatpush.msra.mxu0 0.0
  %113 = vmatpush.msra.mxu0 0.0
  %114 = vmatpush.msra.mxu0 0.0
  %115 = vmatpush.msra.mxu0 %v89
  %116 = vmatmul.f32.gmra.mxu0 %v98
  %v117 = vpop.f32.mrf.mxu0
  %v118 = vadd.f32 %v94, %v117
  %119 = vdwg.mxu0
  %120 = vmatpush.msra.mxu0 0.0
  %121 = vmatpush.msra.mxu0 0.0
  %122 = vmatpush.msra.mxu0 0.0
  %123 = vmatpush.msra.mxu0 0.0
  %124 = vmatpush.msra.mxu0 0.0
  %125 = vmatpush.msra.mxu0 0.0
  %126 = vmatpush.msra.mxu0 0.0
  %127 = vmatpush.msra.mxu0 0.0
  %128 = vmatpush.msra.mxu0 0.0
  %129 = vmatpush.msra.mxu0 0.0
  %130 = vmatpush.msra.mxu0 0.0
  %131 = vmatpush.msra.mxu0 0.0
  %132 = vmatpush.msra.mxu0 0.0
  %133 = vmatpush.msra.mxu0 0.0
  %134 = vmatpush.msra.mxu0 0.0
  %135 = vmatpush.msra.mxu0 %v90
  %136 = vmatmul.f32.gmra.mxu0 %v98
  %v137 = vpop.f32.mrf.mxu0
  %v138 = vadd.f32 %v94, %v137
  %139 = vdwg.mxu0
  %v140 = vmax.f32 %v118, 0.0
  %v141 = vmax.f32 %v138, 0.0
  %143 = vset.pattern.permute.xlu0 0
  %144 = vperm.xlu0 %143, %v25
  %v145 = vpop.permute.xlu0 %144
  %148 = vset.pattern.permute.xlu0 0
  %149 = vperm.xlu0 %148, %v26
  %v150 = vpop.permute.xlu0 %149
  %v153 = vsel %vm40, %v19, 0
  %v156 = vsel %vm40, %v20, 0
  %v159 = vsel %vm44, %v30, 0
  %161 = vmatpush.msra.mxu0 0.0
  %162 = vmatpush.msra.mxu0 0.0
  %163 = vmatpush.msra.mxu0 0.0
  %164 = vmatpush.msra.mxu0 0.0
  %165 = vmatpush.msra.mxu0 0.0
  %166 = vmatpush.msra.mxu0 0.0
  %167 = vmatpush.msra.mxu0 0.0
  %168 = vmatpush.msra.mxu0 0.0
  %169 = vmatpush.msra.mxu0 0.0
  %170 = vmatpush.msra.mxu0 0.0
  %171 = vmatpush.msra.mxu0 0.0
  %172 = vmatpush.msra.mxu0 0.0
  %173 = vmatpush.msra.mxu0 0.0
  %174 = vmatpush.msra.mxu0 0.0
  %175 = vmatpush.msra.mxu0 0.0
  %176 = vmatpush.msra.mxu0 %v159
  %177 = vmatmul.f32.gmra.mxu0 %v153
  %v178 = vpop.f32.mrf.mxu0
  %v179 = vadd.f32 %v145, %v178
  %180 = vmatmul.f32.gmra.mxu0 %v156
  %v181 = vpop.f32.mrf.mxu0
  %v182 = vadd.f32 %v150, %v181
  %183 = vdwg.mxu0
  %v184 = vmax.f32 %v179, 0.0
  %v185 = vmax.f32 %v182, 0.0
  %187 = vset.pattern.permute.xlu0 0
  %188 = vperm.xlu0 %187, %v27
  %v189 = vpop.permute.xlu0 %188
  %v192 = vsel %vm96, %v21, 0
  %194 = vmatpush.msra.mxu0 0.0
  %195 = vmatpush.msra.mxu0 0.0
  %196 = vmatpush.msra.mxu0 0.0
  %197 = vmatpush.msra.mxu0 0.0
  %198 = vmatpush.msra.mxu0 0.0
  %199 = vmatpush.msra.mxu0 0.0
  %200 = vmatpush.msra.mxu0 0.0
  %201 = vmatpush.msra.mxu0 0.0
  %202 = vmatpush.msra.mxu0 0.0
  %203 = vmatpush.msra.mxu0 0.0
  %204 = vmatpush.msra.mxu0 0.0
  %205 = vmatpush.msra.mxu0 0.0
  %206 = vmatpush.msra.mxu0 0.0
  %207 = vmatpush.msra.mxu0 0.0
  %208 = vmatpush.msra.mxu0 0.0
  %209 = vmatpush.msra.mxu0 %v184
  %210 = vmatmul.f32.gmra.mxu0 %v192
  %v211 = vpop.f32.mrf.mxu0
  %v212 = vadd.f32 %v189, %v211
  %213 = vdwg.mxu0
  %v214 = vmax.f32 %v212, 0.0
  %215 = vxpose.xlu0.b32.start [1/16] %v214, 128
  %216 = vxpose.xlu0.b32.cont [2/16] 0.0, 128
  %217 = vxpose.xlu0.b32.cont [3/16] 0.0, 128
  %218 = vxpose.xlu0.b32.cont [4/16] 0.0, 128
  %219 = vxpose.xlu0.b32.cont [5/16] 0.0, 128
  %220 = vxpose.xlu0.b32.cont [6/16] 0.0, 128
  %221 = vxpose.xlu0.b32.cont [7/16] 0.0, 128
  %222 = vxpose.xlu0.b32.cont [8/16] 0.0, 128
  %223 = vxpose.xlu0.b32.cont [9/16] 0.0, 128
  %224 = vxpose.xlu0.b32.cont [10/16] 0.0, 128
  %225 = vxpose.xlu0.b32.cont [11/16] 0.0, 128
  %226 = vxpose.xlu0.b32.cont [12/16] 0.0, 128
  %227 = vxpose.xlu0.b32.cont [13/16] 0.0, 128
  %228 = vxpose.xlu0.b32.cont [14/16] 0.0, 128
  %229 = vxpose.xlu0.b32.cont [15/16] 0.0, 128
  %230 = vxpose.xlu0.b32.end [16/16] 0.0, 128
  %v231 = vpop.trf.xlu0
  %v232 = vpop.trf.xlu0
  %v233 = vpop.trf.xlu0
  %v234 = vpop.trf.xlu0
  %v235 = vpop.trf.xlu0
  %v236 = vpop.trf.xlu0
  %v237 = vpop.trf.xlu0
  %v238 = vpop.trf.xlu0
  %v239 = vpop.trf.xlu0
  %v240 = vpop.trf.xlu0
  %v241 = vpop.trf.xlu0
  %v242 = vpop.trf.xlu0
  %v243 = vpop.trf.xlu0
  %v244 = vpop.trf.xlu0
  %v245 = vpop.trf.xlu0
  %v246 = vpop.trf.xlu0
  %v248 = vsel %vm96, %v231, 0
  %250 = vmatpush.msra.mxu0 0.0
  %251 = vmatpush.msra.mxu0 0.0
  %252 = vmatpush.msra.mxu0 0.0
  %253 = vmatpush.msra.mxu0 0.0
  %254 = vmatpush.msra.mxu0 0.0
  %255 = vmatpush.msra.mxu0 0.0
  %256 = vmatpush.msra.mxu0 0.0
  %257 = vmatpush.msra.mxu0 0.0
  %258 = vmatpush.msra.mxu0 0.0
  %259 = vmatpush.msra.mxu0 0.0
  %260 = vmatpush.msra.mxu0 0.0
  %261 = vmatpush.msra.mxu0 0.0
  %262 = vmatpush.msra.mxu0 0.0
  %263 = vmatpush.msra.mxu0 0.0
  %264 = vmatpush.msra.mxu0 0.0
  %265 = vmatpush.msra.mxu0 %v140
  %266 = vmatmul.f32.gmra.mxu0 %v248
  %v267 = vpop.f32.mrf.mxu0
  %v268 = vadd.f32 0.0, %v267
  %269 = vdwg.mxu0
  %270 = vmatpush.msra.mxu0 0.0
  %271 = vmatpush.msra.mxu0 0.0
  %272 = vmatpush.msra.mxu0 0.0
  %273 = vmatpush.msra.mxu0 0.0
  %274 = vmatpush.msra.mxu0 0.0
  %275 = vmatpush.msra.mxu0 0.0
  %276 = vmatpush.msra.mxu0 0.0
  %277 = vmatpush.msra.mxu0 0.0
  %278 = vmatpush.msra.mxu0 0.0
  %279 = vmatpush.msra.mxu0 0.0
  %280 = vmatpush.msra.mxu0 0.0
  %281 = vmatpush.msra.mxu0 0.0
  %282 = vmatpush.msra.mxu0 0.0
  %283 = vmatpush.msra.mxu0 0.0
  %284 = vmatpush.msra.mxu0 0.0
  %285 = vmatpush.msra.mxu0 %v141
  %286 = vmatmul.f32.gmra.mxu0 %v248
  %v287 = vpop.f32.mrf.mxu0
  %v288 = vadd.f32 0.0, %v287
  %289 = vdwg.mxu0
  %v290 = vrot.slane %v268, 4
  %v291 = vmax.f32 %v268, %v290
  %v292 = vrot.slane %v291, 2
  %v293 = vmax.f32 %v291, %v292
  %v294 = vrot.slane %v293, 1
  %v295 = vmax.f32 %v293, %v294
  %v296 = vrot.slane %v288, 4
  %v297 = vmax.f32 %v288, %v296
  %v298 = vrot.slane %v297, 2
  %v299 = vmax.f32 %v297, %v298
  %v300 = vrot.slane %v299, 1
  %v301 = vmax.f32 %v299, %v300
  %v302 = vsub.f32 %v268, %v295
  %v303 = vsub.f32 %v288, %v301
  %v304 = vmul.f32 %v302, 1.442695
  %v305 = vpow.pop %v304
  %v306 = vmul.f32 %v303, 1.442695
  %v307 = vpow.pop %v306
  %v308 = vrot.slane %v305, 4
  %v309 = vadd.f32 %v305, %v308
  %v310 = vrot.slane %v309, 2
  %v311 = vadd.f32 %v309, %v310
  %v312 = vrot.slane %v311, 1
  %v313 = vadd.f32 %v311, %v312
  %v314 = vrot.slane %v307, 4
  %v315 = vadd.f32 %v307, %v314
  %v316 = vrot.slane %v315, 2
  %v317 = vadd.f32 %v315, %v316
  %v318 = vrot.slane %v317, 1
  %v319 = vadd.f32 %v317, %v318
  %v320 = vrcp.pop %v313
  %v321 = vmul.f32 %v313, %v320
  %v322 = vsub.f32 1.0, %v321
  %v323 = vmul.f32 %v320, %v322
  %v324 = vadd.f32 %v320, %v323
  %vm325 = vweird.f32 %v313
  %vm326 = vweird.f32 %v320
  %vm327 = vmor %vm325, %vm326
  %v328 = vsel %vm327, %v320, %v324
  %v329 = vand.u32 2147483647, %v313
  %vm330 = vcmp.eq.f32.partialorder %v329, 8.507059e+37
  %v331 = vand.u32 %v313, 2147483648
  %v332 = vor.u32 1.1754944e-38, %v331
  %v333 = vsel %vm330, %v332, %v328
  %v334 = vmul.f32 %v305, %v333
  %v335 = vrcp.pop %v319
  %v336 = vmul.f32 %v319, %v335
  %v337 = vsub.f32 1.0, %v336
  %v338 = vmul.f32 %v335, %v337
  %v339 = vadd.f32 %v335, %v338
  %vm340 = vweird.f32 %v319
  %vm341 = vweird.f32 %v335
  %vm342 = vmor %vm340, %vm341
  %v343 = vsel %vm342, %v335, %v339
  %v344 = vand.u32 2147483647, %v319
  %vm345 = vcmp.eq.f32.partialorder %v344, 8.507059e+37
  %v346 = vand.u32 %v319, 2147483648
  %v347 = vor.u32 1.1754944e-38, %v346
  %v348 = vsel %vm345, %v347, %v343
  %v349 = vmul.f32 %v307, %v348
  %v351 = vsel %vm96, %v185, 0
  %353 = vmatpush.msra.mxu0 0.0
  %354 = vmatpush.msra.mxu0 0.0
  %355 = vmatpush.msra.mxu0 0.0
  %356 = vmatpush.msra.mxu0 0.0
  %357 = vmatpush.msra.mxu0 0.0
  %358 = vmatpush.msra.mxu0 0.0
  %359 = vmatpush.msra.mxu0 0.0
  %360 = vmatpush.msra.mxu0 0.0
  %361 = vmatpush.msra.mxu0 0.0
  %362 = vmatpush.msra.mxu0 0.0
  %363 = vmatpush.msra.mxu0 0.0
  %364 = vmatpush.msra.mxu0 0.0
  %365 = vmatpush.msra.mxu0 0.0
  %366 = vmatpush.msra.mxu0 0.0
  %367 = vmatpush.msra.mxu0 0.0
  %368 = vmatpush.msra.mxu0 %v334
  %369 = vmatmul.f32.gmra.mxu0 %v351
  %v370 = vpop.f32.mrf.mxu0
  %v371 = vadd.f32 0.0, %v370
  %372 = vdwg.mxu0
  %373 = vmatpush.msra.mxu0 0.0
  %374 = vmatpush.msra.mxu0 0.0
  %375 = vmatpush.msra.mxu0 0.0
  %376 = vmatpush.msra.mxu0 0.0
  %377 = vmatpush.msra.mxu0 0.0
  %378 = vmatpush.msra.mxu0 0.0
  %379 = vmatpush.msra.mxu0 0.0
  %380 = vmatpush.msra.mxu0 0.0
  %381 = vmatpush.msra.mxu0 0.0
  %382 = vmatpush.msra.mxu0 0.0
  %383 = vmatpush.msra.mxu0 0.0
  %384 = vmatpush.msra.mxu0 0.0
  %385 = vmatpush.msra.mxu0 0.0
  %386 = vmatpush.msra.mxu0 0.0
  %387 = vmatpush.msra.mxu0 0.0
  %388 = vmatpush.msra.mxu0 %v349
  %389 = vmatmul.f32.gmra.mxu0 %v351
  %v390 = vpop.f32.mrf.mxu0
  %v391 = vadd.f32 0.0, %v390
  %392 = vdwg.mxu0
  %394 = vset.pattern.permute.xlu0 0
  %395 = vperm.xlu0 %394, %v28
  %v396 = vpop.permute.xlu0 %395
  %v399 = vsel %vm96, %v22, 0
  %401 = vmatpush.msra.mxu0 0.0
  %402 = vmatpush.msra.mxu0 0.0
  %403 = vmatpush.msra.mxu0 0.0
  %404 = vmatpush.msra.mxu0 0.0
  %405 = vmatpush.msra.mxu0 0.0
  %406 = vmatpush.msra.mxu0 0.0
  %407 = vmatpush.msra.mxu0 0.0
  %408 = vmatpush.msra.mxu0 0.0
  %409 = vmatpush.msra.mxu0 0.0
  %410 = vmatpush.msra.mxu0 0.0
  %411 = vmatpush.msra.mxu0 0.0
  %412 = vmatpush.msra.mxu0 0.0
  %413 = vmatpush.msra.mxu0 0.0
  %414 = vmatpush.msra.mxu0 0.0
  %415 = vmatpush.msra.mxu0 0.0
  %416 = vmatpush.msra.mxu0 %v371
  %417 = vmatmul.f32.gmra.mxu0 %v399
  %v418 = vpop.f32.mrf.mxu0
  %v419 = vadd.f32 %v396, %v418
  %420 = vdwg.mxu0
  %421 = vmatpush.msra.mxu0 0.0
  %422 = vmatpush.msra.mxu0 0.0
  %423 = vmatpush.msra.mxu0 0.0
  %424 = vmatpush.msra.mxu0 0.0
  %425 = vmatpush.msra.mxu0 0.0
  %426 = vmatpush.msra.mxu0 0.0
  %427 = vmatpush.msra.mxu0 0.0
  %428 = vmatpush.msra.mxu0 0.0
  %429 = vmatpush.msra.mxu0 0.0
  %430 = vmatpush.msra.mxu0 0.0
  %431 = vmatpush.msra.mxu0 0.0
  %432 = vmatpush.msra.mxu0 0.0
  %433 = vmatpush.msra.mxu0 0.0
  %434 = vmatpush.msra.mxu0 0.0
  %435 = vmatpush.msra.mxu0 0.0
  %436 = vmatpush.msra.mxu0 %v391
  %437 = vmatmul.f32.gmra.mxu0 %v399
  %v438 = vpop.f32.mrf.mxu0
  %v439 = vadd.f32 %v396, %v438
  %440 = vdwg.mxu0
  %v441 = vmax.f32 %v419, 0.0
  %v442 = vmax.f32 %v439, 0.0
  %v445 = vrot.slane %v334, 4
  %v446 = vrot.slane %v349, 4
  %v449 = vsel %vm44, %v441, %v445
  %v450 = vsel %vm44, %v442, %v446
  %451 = vst [vmem:[%s4] sm:$0xff] %v449
  %452 = vst [vmem:[%s4 + $0x8] sm:$0xff] %v450
  %453 = vst [vmem:[%s4 + $0x10] sm:$0xf] %v445
  %454 = vst [vmem:[%s4 + $0x18] sm:$0xf] %v446
  %s455 = scalar_lea.vmem %s0, 8
  %v456 = vld [vmem:[%s455] sm:$0xff]
  %s457 = scalar_lea.vmem %s1, 4
  %v458 = vld [vmem:[%s457] sm:$0xf]
  %460 = vst [vmem:[#allocation1] ss:$2 sm:$0xff] %v456
  %v461 = vld.sshfl [vmem:[#allocation1] sm:$0xff pattern:$0x75316420]
  %v462 = vld.sshfl [vmem:[#allocation1 + $0x8] sm:$0xff pattern:$0x75316420]
  %v463 = vsel %vm44, %v461, 0
  %v465 = vsel %vm44, %v462, 0
  %467 = vmatpush.msra.mxu0 0.0
  %468 = vmatpush.msra.mxu0 0.0
  %469 = vmatpush.msra.mxu0 0.0
  %470 = vmatpush.msra.mxu0 0.0
  %471 = vmatpush.msra.mxu0 0.0
  %472 = vmatpush.msra.mxu0 0.0
  %473 = vmatpush.msra.mxu0 0.0
  %474 = vmatpush.msra.mxu0 0.0
  %475 = vmatpush.msra.mxu0 0.0
  %476 = vmatpush.msra.mxu0 0.0
  %477 = vmatpush.msra.mxu0 0.0
  %478 = vmatpush.msra.mxu0 0.0
  %479 = vmatpush.msra.mxu0 0.0
  %480 = vmatpush.msra.mxu0 0.0
  %481 = vmatpush.msra.mxu0 0.0
  %482 = vmatpush.msra.mxu0 %v463
  %483 = vmatmul.f32.gmra.mxu0 %v42
  %v484 = vpop.f32.mrf.mxu0
  %v485 = vadd.f32 %v34, %v484
  %486 = vdwg.mxu0
  %487 = vmatpush.msra.mxu0 0.0
  %488 = vmatpush.msra.mxu0 0.0
  %489 = vmatpush.msra.mxu0 0.0
  %490 = vmatpush.msra.mxu0 0.0
  %491 = vmatpush.msra.mxu0 0.0
  %492 = vmatpush.msra.mxu0 0.0
  %493 = vmatpush.msra.mxu0 0.0
  %494 = vmatpush.msra.mxu0 0.0
  %495 = vmatpush.msra.mxu0 0.0
  %496 = vmatpush.msra.mxu0 0.0
  %497 = vmatpush.msra.mxu0 0.0
  %498 = vmatpush.msra.mxu0 0.0
  %499 = vmatpush.msra.mxu0 0.0
  %500 = vmatpush.msra.mxu0 0.0
  %501 = vmatpush.msra.mxu0 0.0
  %502 = vmatpush.msra.mxu0 %v465
  %503 = vmatmul.f32.gmra.mxu0 %v42
  %v504 = vpop.f32.mrf.mxu0
  %v505 = vadd.f32 %v34, %v504
  %506 = vdwg.mxu0
  %v507 = vmax.f32 %v485, 0.0
  %v508 = vmax.f32 %v505, 0.0
  %509 = vmatpush.msra.mxu0 0.0
  %510 = vmatpush.msra.mxu0 0.0
  %511 = vmatpush.msra.mxu0 0.0
  %512 = vmatpush.msra.mxu0 0.0
  %513 = vmatpush.msra.mxu0 0.0
  %514 = vmatpush.msra.mxu0 0.0
  %515 = vmatpush.msra.mxu0 0.0
  %516 = vmatpush.msra.mxu0 0.0
  %517 = vmatpush.msra.mxu0 0.0
  %518 = vmatpush.msra.mxu0 0.0
  %519 = vmatpush.msra.mxu0 0.0
  %520 = vmatpush.msra.mxu0 0.0
  %521 = vmatpush.msra.mxu0 0.0
  %522 = vmatpush.msra.mxu0 0.0
  %523 = vmatpush.msra.mxu0 0.0
  %524 = vmatpush.msra.mxu0 %v507
  %525 = vmatmul.f32.gmra.mxu0 %v98
  %v526 = vpop.f32.mrf.mxu0
  %v527 = vadd.f32 %v94, %v526
  %528 = vdwg.mxu0
  %529 = vmatpush.msra.mxu0 0.0
  %530 = vmatpush.msra.mxu0 0.0
  %531 = vmatpush.msra.mxu0 0.0
  %532 = vmatpush.msra.mxu0 0.0
  %533 = vmatpush.msra.mxu0 0.0
  %534 = vmatpush.msra.mxu0 0.0
  %535 = vmatpush.msra.mxu0 0.0
  %536 = vmatpush.msra.mxu0 0.0
  %537 = vmatpush.msra.mxu0 0.0
  %538 = vmatpush.msra.mxu0 0.0
  %539 = vmatpush.msra.mxu0 0.0
  %540 = vmatpush.msra.mxu0 0.0
  %541 = vmatpush.msra.mxu0 0.0
  %542 = vmatpush.msra.mxu0 0.0
  %543 = vmatpush.msra.mxu0 0.0
  %544 = vmatpush.msra.mxu0 %v508
  %545 = vmatmul.f32.gmra.mxu0 %v98
  %v546 = vpop.f32.mrf.mxu0
  %v547 = vadd.f32 %v94, %v546
  %548 = vdwg.mxu0
  %v549 = vmax.f32 %v527, 0.0
  %v550 = vmax.f32 %v547, 0.0
  %v552 = vsel %vm44, %v458, 0
  %554 = vmatpush.msra.mxu0 0.0
  %555 = vmatpush.msra.mxu0 0.0
  %556 = vmatpush.msra.mxu0 0.0
  %557 = vmatpush.msra.mxu0 0.0
  %558 = vmatpush.msra.mxu0 0.0
  %559 = vmatpush.msra.mxu0 0.0
  %560 = vmatpush.msra.mxu0 0.0
  %561 = vmatpush.msra.mxu0 0.0
  %562 = vmatpush.msra.mxu0 0.0
  %563 = vmatpush.msra.mxu0 0.0
  %564 = vmatpush.msra.mxu0 0.0
  %565 = vmatpush.msra.mxu0 0.0
  %566 = vmatpush.msra.mxu0 0.0
  %567 = vmatpush.msra.mxu0 0.0
  %568 = vmatpush.msra.mxu0 0.0
  %569 = vmatpush.msra.mxu0 %v552
  %570 = vmatmul.f32.gmra.mxu0 %v153
  %v571 = vpop.f32.mrf.mxu0
  %v572 = vadd.f32 %v145, %v571
  %573 = vmatmul.f32.gmra.mxu0 %v156
  %v574 = vpop.f32.mrf.mxu0
  %v575 = vadd.f32 %v150, %v574
  %576 = vdwg.mxu0
  %v577 = vmax.f32 %v572, 0.0
  %v578 = vmax.f32 %v575, 0.0
  %579 = vmatpush.msra.mxu0 0.0
  %580 = vmatpush.msra.mxu0 0.0
  %581 = vmatpush.msra.mxu0 0.0
  %582 = vmatpush.msra.mxu0 0.0
  %583 = vmatpush.msra.mxu0 0.0
  %584 = vmatpush.msra.mxu0 0.0
  %585 = vmatpush.msra.mxu0 0.0
  %586 = vmatpush.msra.mxu0 0.0
  %587 = vmatpush.msra.mxu0 0.0
  %588 = vmatpush.msra.mxu0 0.0
  %589 = vmatpush.msra.mxu0 0.0
  %590 = vmatpush.msra.mxu0 0.0
  %591 = vmatpush.msra.mxu0 0.0
  %592 = vmatpush.msra.mxu0 0.0
  %593 = vmatpush.msra.mxu0 0.0
  %594 = vmatpush.msra.mxu0 %v577
  %595 = vmatmul.f32.gmra.mxu0 %v192
  %v596 = vpop.f32.mrf.mxu0
  %v597 = vadd.f32 %v189, %v596
  %598 = vdwg.mxu0
  %v599 = vmax.f32 %v597, 0.0
  %600 = vxpose.xlu0.b32.start [1/16] %v599, 128
  %601 = vxpose.xlu0.b32.cont [2/16] 0.0, 128
  %602 = vxpose.xlu0.b32.cont [3/16] 0.0, 128
  %603 = vxpose.xlu0.b32.cont [4/16] 0.0, 128
  %604 = vxpose.xlu0.b32.cont [5/16] 0.0, 128
  %605 = vxpose.xlu0.b32.cont [6/16] 0.0, 128
  %606 = vxpose.xlu0.b32.cont [7/16] 0.0, 128
  %607 = vxpose.xlu0.b32.cont [8/16] 0.0, 128
  %608 = vxpose.xlu0.b32.cont [9/16] 0.0, 128
  %609 = vxpose.xlu0.b32.cont [10/16] 0.0, 128
  %610 = vxpose.xlu0.b32.cont [11/16] 0.0, 128
  %611 = vxpose.xlu0.b32.cont [12/16] 0.0, 128
  %612 = vxpose.xlu0.b32.cont [13/16] 0.0, 128
  %613 = vxpose.xlu0.b32.cont [14/16] 0.0, 128
  %614 = vxpose.xlu0.b32.cont [15/16] 0.0, 128
  %615 = vxpose.xlu0.b32.end [16/16] 0.0, 128
  %v616 = vpop.trf.xlu0
  %v617 = vpop.trf.xlu0
  %v618 = vpop.trf.xlu0
  %v619 = vpop.trf.xlu0
  %v620 = vpop.trf.xlu0
  %v621 = vpop.trf.xlu0
  %v622 = vpop.trf.xlu0
  %v623 = vpop.trf.xlu0
  %v624 = vpop.trf.xlu0
  %v625 = vpop.trf.xlu0
  %v626 = vpop.trf.xlu0
  %v627 = vpop.trf.xlu0
  %v628 = vpop.trf.xlu0
  %v629 = vpop.trf.xlu0
  %v630 = vpop.trf.xlu0
  %v631 = vpop.trf.xlu0
  %v633 = vsel %vm96, %v616, 0
  %635 = vmatpush.msra.mxu0 0.0
  %636 = vmatpush.msra.mxu0 0.0
  %637 = vmatpush.msra.mxu0 0.0
  %638 = vmatpush.msra.mxu0 0.0
  %639 = vmatpush.msra.mxu0 0.0
  %640 = vmatpush.msra.mxu0 0.0
  %641 = vmatpush.msra.mxu0 0.0
  %642 = vmatpush.msra.mxu0 0.0
  %643 = vmatpush.msra.mxu0 0.0
  %644 = vmatpush.msra.mxu0 0.0
  %645 = vmatpush.msra.mxu0 0.0
  %646 = vmatpush.msra.mxu0 0.0
  %647 = vmatpush.msra.mxu0 0.0
  %648 = vmatpush.msra.mxu0 0.0
  %649 = vmatpush.msra.mxu0 0.0
  %650 = vmatpush.msra.mxu0 %v549
  %651 = vmatmul.f32.gmra.mxu0 %v633
  %v652 = vpop.f32.mrf.mxu0
  %v653 = vadd.f32 0.0, %v652
  %654 = vdwg.mxu0
  %655 = vmatpush.msra.mxu0 0.0
  %656 = vmatpush.msra.mxu0 0.0
  %657 = vmatpush.msra.mxu0 0.0
  %658 = vmatpush.msra.mxu0 0.0
  %659 = vmatpush.msra.mxu0 0.0
  %660 = vmatpush.msra.mxu0 0.0
  %661 = vmatpush.msra.mxu0 0.0
  %662 = vmatpush.msra.mxu0 0.0
  %663 = vmatpush.msra.mxu0 0.0
  %664 = vmatpush.msra.mxu0 0.0
  %665 = vmatpush.msra.mxu0 0.0
  %666 = vmatpush.msra.mxu0 0.0
  %667 = vmatpush.msra.mxu0 0.0
  %668 = vmatpush.msra.mxu0 0.0
  %669 = vmatpush.msra.mxu0 0.0
  %670 = vmatpush.msra.mxu0 %v550
  %671 = vmatmul.f32.gmra.mxu0 %v633
  %v672 = vpop.f32.mrf.mxu0
  %v673 = vadd.f32 0.0, %v672
  %674 = vdwg.mxu0
  %v675 = vrot.slane %v653, 4
  %v676 = vmax.f32 %v653, %v675
  %v677 = vrot.slane %v676, 2
  %v678 = vmax.f32 %v676, %v677
  %v679 = vrot.slane %v678, 1
  %v680 = vmax.f32 %v678, %v679
  %v681 = vrot.slane %v673, 4
  %v682 = vmax.f32 %v673, %v681
  %v683 = vrot.slane %v682, 2
  %v684 = vmax.f32 %v682, %v683
  %v685 = vrot.slane %v684, 1
  %v686 = vmax.f32 %v684, %v685
  %v687 = vsub.f32 %v653, %v680
  %v688 = vsub.f32 %v673, %v686
  %v689 = vmul.f32 %v687, 1.442695
  %v690 = vpow.pop %v689
  %v691 = vmul.f32 %v688, 1.442695
  %v692 = vpow.pop %v691
  %v693 = vrot.slane %v690, 4
  %v694 = vadd.f32 %v690, %v693
  %v695 = vrot.slane %v694, 2
  %v696 = vadd.f32 %v694, %v695
  %v697 = vrot.slane %v696, 1
  %v698 = vadd.f32 %v696, %v697
  %v699 = vrot.slane %v692, 4
  %v700 = vadd.f32 %v692, %v699
  %v701 = vrot.slane %v700, 2
  %v702 = vadd.f32 %v700, %v701
  %v703 = vrot.slane %v702, 1
  %v704 = vadd.f32 %v702, %v703
  %v705 = vrcp.pop %v698
  %v706 = vmul.f32 %v698, %v705
  %v707 = vsub.f32 1.0, %v706
  %v708 = vmul.f32 %v705, %v707
  %v709 = vadd.f32 %v705, %v708
  %vm710 = vweird.f32 %v698
  %vm711 = vweird.f32 %v705
  %vm712 = vmor %vm710, %vm711
  %v713 = vsel %vm712, %v705, %v709
  %v714 = vand.u32 2147483647, %v698
  %vm715 = vcmp.eq.f32.partialorder %v714, 8.507059e+37
  %v716 = vand.u32 %v698, 2147483648
  %v717 = vor.u32 1.1754944e-38, %v716
  %v718 = vsel %vm715, %v717, %v713
  %v719 = vmul.f32 %v690, %v718
  %v720 = vrcp.pop %v704
  %v721 = vmul.f32 %v704, %v720
  %v722 = vsub.f32 1.0, %v721
  %v723 = vmul.f32 %v720, %v722
  %v724 = vadd.f32 %v720, %v723
  %vm725 = vweird.f32 %v704
  %vm726 = vweird.f32 %v720
  %vm727 = vmor %vm725, %vm726
  %v728 = vsel %vm727, %v720, %v724
  %v729 = vand.u32 2147483647, %v704
  %vm730 = vcmp.eq.f32.partialorder %v729, 8.507059e+37
  %v731 = vand.u32 %v704, 2147483648
  %v732 = vor.u32 1.1754944e-38, %v731
  %v733 = vsel %vm730, %v732, %v728
  %v734 = vmul.f32 %v692, %v733
  %v736 = vsel %vm96, %v578, 0
  %738 = vmatpush.msra.mxu0 0.0
  %739 = vmatpush.msra.mxu0 0.0
  %740 = vmatpush.msra.mxu0 0.0
  %741 = vmatpush.msra.mxu0 0.0
  %742 = vmatpush.msra.mxu0 0.0
  %743 = vmatpush.msra.mxu0 0.0
  %744 = vmatpush.msra.mxu0 0.0
  %745 = vmatpush.msra.mxu0 0.0
  %746 = vmatpush.msra.mxu0 0.0
  %747 = vmatpush.msra.mxu0 0.0
  %748 = vmatpush.msra.mxu0 0.0
  %749 = vmatpush.msra.mxu0 0.0
  %750 = vmatpush.msra.mxu0 0.0
  %751 = vmatpush.msra.mxu0 0.0
  %752 = vmatpush.msra.mxu0 0.0
  %753 = vmatpush.msra.mxu0 %v719
  %754 = vmatmul.f32.gmra.mxu0 %v736
  %v755 = vpop.f32.mrf.mxu0
  %v756 = vadd.f32 0.0, %v755
  %757 = vdwg.mxu0
  %758 = vmatpush.msra.mxu0 0.0
  %759 = vmatpush.msra.mxu0 0.0
  %760 = vmatpush.msra.mxu0 0.0
  %761 = vmatpush.msra.mxu0 0.0
  %762 = vmatpush.msra.mxu0 0.0
  %763 = vmatpush.msra.mxu0 0.0
  %764 = vmatpush.msra.mxu0 0.0
  %765 = vmatpush.msra.mxu0 0.0
  %766 = vmatpush.msra.mxu0 0.0
  %767 = vmatpush.msra.mxu0 0.0
  %768 = vmatpush.msra.mxu0 0.0
  %769 = vmatpush.msra.mxu0 0.0
  %770 = vmatpush.msra.mxu0 0.0
  %771 = vmatpush.msra.mxu0 0.0
  %772 = vmatpush.msra.mxu0 0.0
  %773 = vmatpush.msra.mxu0 %v734
  %774 = vmatmul.f32.gmra.mxu0 %v736
  %v775 = vpop.f32.mrf.mxu0
  %v776 = vadd.f32 0.0, %v775
  %777 = vdwg.mxu0
  %778 = vmatpush.msra.mxu0 0.0
  %779 = vmatpush.msra.mxu0 0.0
  %780 = vmatpush.msra.mxu0 0.0
  %781 = vmatpush.msra.mxu0 0.0
  %782 = vmatpush.msra.mxu0 0.0
  %783 = vmatpush.msra.mxu0 0.0
  %784 = vmatpush.msra.mxu0 0.0
  %785 = vmatpush.msra.mxu0 0.0
  %786 = vmatpush.msra.mxu0 0.0
  %787 = vmatpush.msra.mxu0 0.0
  %788 = vmatpush.msra.mxu0 0.0
  %789 = vmatpush.msra.mxu0 0.0
  %790 = vmatpush.msra.mxu0 0.0
  %791 = vmatpush.msra.mxu0 0.0
  %792 = vmatpush.msra.mxu0 0.0
  %793 = vmatpush.msra.mxu0 %v756
  %794 = vmatmul.f32.gmra.mxu0 %v399
  %v795 = vpop.f32.mrf.mxu0
  %v796 = vadd.f32 %v396, %v795
  %797 = vdwg.mxu0
  %798 = vmatpush.msra.mxu0 0.0
  %799 = vmatpush.msra.mxu0 0.0
  %800 = vmatpush.msra.mxu0 0.0
  %801 = vmatpush.msra.mxu0 0.0
  %802 = vmatpush.msra.mxu0 0.0
  %803 = vmatpush.msra.mxu0 0.0
  %804 = vmatpush.msra.mxu0 0.0
  %805 = vmatpush.msra.mxu0 0.0
  %806 = vmatpush.msra.mxu0 0.0
  %807 = vmatpush.msra.mxu0 0.0
  %808 = vmatpush.msra.mxu0 0.0
  %809 = vmatpush.msra.mxu0 0.0
  %810 = vmatpush.msra.mxu0 0.0
  %811 = vmatpush.msra.mxu0 0.0
  %812 = vmatpush.msra.mxu0 0.0
  %813 = vmatpush.msra.mxu0 %v776
  %814 = vmatmul.f32.gmra.mxu0 %v399
  %v815 = vpop.f32.mrf.mxu0
  %v816 = vadd.f32 %v396, %v815
  %817 = vdwg.mxu0
  %v818 = vmax.f32 %v796, 0.0
  %v819 = vmax.f32 %v816, 0.0
  %v822 = vrot.slane %v719, 4
  %v823 = vrot.slane %v734, 4
  %v826 = vsel %vm44, %v818, %v822
  %v827 = vsel %vm44, %v819, %v823
  %s828 = scalar_lea.vmem %s4, 32
  %829 = vst [vmem:[%s828] sm:$0xff] %v826
  %830 = vst [vmem:[%s828 + $0x8] sm:$0xff] %v827
  %831 = vst [vmem:[%s828 + $0x10] sm:$0xf] %v822
  %832 = vst [vmem:[%s828 + $0x18] sm:$0xf] %v823
  // Predicated region
  $region18: #{tpu_custom_call.1} parent=0 // pred_check
    _
  $region19: #{tpu_custom_call.1} parent=0 // pred_check_branch
    %834 = sbr.rel (0) target = $region21
  $region20: #{tpu_custom_call.1} parent=0 // pred_region
    _
  $region21: #{tpu_custom_call.1} parent=0 // pred_fallthru
    _
  // Predicated region
  $region22: #{tpu_custom_call.1} parent=0 // pred_check
    _
  $region23: #{tpu_custom_call.1} parent=0 // pred_check_branch
    %836 = sbr.rel (0) target = $region25
  $region24: #{tpu_custom_call.1} parent=0 // pred_region
    _
  $region25: #{tpu_custom_call.1} parent=0 // pred_fallthru
    _

</llo_original>
